<compile_context>
chip_gen: v6e
topology: v6e:2x2x1
jax: 0.10.0
libtpu: 0.0.40
codegen_flags: <defaults>
</compile_context>

<pallas_src>
import functools

import jax
import jax.numpy as jnp
import numpy as np
from jax import lax
from jax.experimental import pallas as pl
from jax.experimental.pallas import tpu as pltpu

EPS = 1e-5  # PyTorch BatchNorm2d default


# ----------------------------- Pallas kernels ------------------------------ #

def _conv_stats_kernel(cols_ref, w_ref, bias_ref, conv_ref, sum_ref, sq_ref):
    """Pass 1 (one batch element per grid step).

    cols_ref: (1, H*W, K*K*Cin)  tap-folded im2col rows (pool-phase ordered)
    w_ref:    (K*K*Cin, C_pad)   folded weights, zero-padded output channels
    bias_ref: (1, C_pad)
    conv_ref: (1, H*W, C_pad)    f32 conv activations (consumed by pass 2)
    sum_ref / sq_ref: (1, 1, C_pad) per-image channel sum / sum-of-squares partials
    """
    acc = jnp.dot(cols_ref[0], w_ref[...], preferred_element_type=jnp.float32)
    acc = acc + bias_ref[...]                                   # (HW, C_pad)
    conv_ref[0] = acc
    sum_ref[0] = jnp.sum(acc, axis=0, keepdims=True)
    sq_ref[0] = jnp.sum(acc * acc, axis=0, keepdims=True)


def _bn_relu_pool_kernel(conv_ref, scale_ref, shift_ref, o_ref, *, q):
    """Pass 2 (one batch element per grid step): BN affine + ReLU + fused 2x2 max-pool.

    Rows of conv_ref are ordered as 4 pool-phase slabs of q = Hp*Wp rows each
    (slab (a, b) holds pixel (2i+a, 2j+b) at row i*Wp+j), so pooling is three
    elementwise maxima of aligned contiguous slices -- no strided loads, no scratch.
    """
    y = jnp.maximum(conv_ref[0] * scale_ref[...] + shift_ref[...], 0.0)   # (4q, C_pad)
    a = jnp.maximum(y[0 * q:1 * q, :], y[1 * q:2 * q, :])
    b = jnp.maximum(y[2 * q:3 * q, :], y[3 * q:4 * q, :])
    o_ref[0] = jnp.maximum(a, b)                                          # (q, C_pad)


# ------------------------------- wrapper ----------------------------------- #

@jax.jit
def conv_block_forward(x_nchw, w_oihw, bias, gamma, beta):
    """ConvBlock forward. x_nchw: (N, Cin, H, W) f32. Returns (N, Cout, H//2, W//2)."""
    N, Cin, H, W = x_nchw.shape
    Cout, _, K, _ = w_oihw.shape
    assert K % 2 == 1 and H % 2 == 0 and W % 2 == 0   # module defaults: k3 s1 p1, pool 2x2
    Hp, Wp = H // 2, W // 2
    q = Hp * Wp
    HW = H * W
    KKC = K * K * Cin
    C_pad = max(128, ((Cout + 127) // 128) * 128)      # lane-dense channel padding
    pad = K // 2                                       # 'same' padding (=1 for K=3)

    # ---- wrapper-side layout (XLA): tap-folded im2col in pool-phase row order ----
    x_nhwc = jnp.transpose(x_nchw, (0, 2, 3, 1)).astype(jnp.float32)          # (N,H,W,Cin)
    x_padded = jnp.pad(x_nhwc, ((0, 0), (pad, pad), (pad, pad), (0, 0)))
    taps = [x_padded[:, kh:kh + H, kw:kw + W, :] for kh in range(K) for kw in range(K)]
    cols = jnp.concatenate(taps, axis=-1)                                     # (N,H,W,KKC)
    # Pool-phase permutation: slab (a, b) holds pixel (2i+a, 2j+b) at row i*Wp + j.
    cols = cols.reshape(N, Hp, 2, Wp, 2, KKC)
    cols = jnp.transpose(cols, (0, 2, 4, 1, 3, 5)).reshape(N, HW, KKC)

    # Weights (Cout, Cin, K, K) -> (K*K*Cin, C_pad); tap order matches the concat above.
    wt = jnp.transpose(w_oihw, (2, 3, 1, 0)).reshape(KKC, Cout).astype(jnp.float32)
    wt = jnp.pad(wt, ((0, 0), (0, C_pad - Cout)))
    bias_pad = jnp.pad(bias.astype(jnp.float32), (0, C_pad - Cout)).reshape(1, C_pad)
    g_pad = jnp.pad(gamma.astype(jnp.float32), (0, C_pad - Cout)).reshape(1, C_pad)
    b_pad = jnp.pad(beta.astype(jnp.float32), (0, C_pad - Cout)).reshape(1, C_pad)

    # ---- pass 1: conv (single MXU matmul per image) + per-image BN stat partials ----
    conv, sums, sqs = pl.pallas_call(
        _conv_stats_kernel,
        out_shape=(jax.ShapeDtypeStruct((N, HW, C_pad), jnp.float32),
                   jax.ShapeDtypeStruct((N, 1, C_pad), jnp.float32),
                   jax.ShapeDtypeStruct((N, 1, C_pad), jnp.float32)),
        grid=(N,),
        in_specs=[pl.BlockSpec((1, HW, KKC), lambda n: (n, 0, 0)),
                  pl.BlockSpec((KKC, C_pad), lambda n: (0, 0)),
                  pl.BlockSpec((1, C_pad), lambda n: (0, 0))],
        out_specs=(pl.BlockSpec((1, HW, C_pad), lambda n: (n, 0, 0)),
                   pl.BlockSpec((1, 1, C_pad), lambda n: (n, 0, 0)),
                   pl.BlockSpec((1, 1, C_pad), lambda n: (n, 0, 0))),
        compiler_params=pltpu.CompilerParams(dimension_semantics=("parallel",)),
    )(cols, wt, bias_pad)

    # ---- tiny BN finalize (exact batch statistics, biased variance as in BN training) ----
    cnt = jnp.float32(N * H * W)
    mean = jnp.sum(sums, axis=0) / cnt                              # (1, C_pad)
    var = jnp.maximum(jnp.sum(sqs, axis=0) / cnt - mean * mean, 0.0)
    scale = g_pad * lax.rsqrt(var + EPS)
    shift = b_pad - mean * scale

    # ---- pass 2: BN affine + ReLU + fused 2x2 max-pool, lane-dense store ----
    out = pl.pallas_call(
        functools.partial(_bn_relu_pool_kernel, q=q),
        out_shape=jax.ShapeDtypeStruct((N, q, C_pad), jnp.float32),
        grid=(N,),
        in_specs=[pl.BlockSpec((1, HW, C_pad), lambda n: (n, 0, 0)),
                  pl.BlockSpec((1, C_pad), lambda n: (0, 0)),
                  pl.BlockSpec((1, C_pad), lambda n: (0, 0))],
        out_specs=pl.BlockSpec((1, q, C_pad), lambda n: (n, 0, 0)),
        compiler_params=pltpu.CompilerParams(dimension_semantics=("parallel",)),
    )(conv, scale, shift)

    # Strip channel padding, back to NCHW.
    out = out[:, :, :Cout].reshape(N, Hp, Wp, Cout)
    return jnp.transpose(out, (0, 3, 1, 2))


# ------------------------------ reference ---------------------------------- #

def conv_block_reference(x_nchw, w_oihw, bias, gamma, beta):
    conv = lax.conv_general_dilated(
        x_nchw, w_oihw, window_strides=(1, 1), padding=((1, 1), (1, 1)),
        dimension_numbers=("NCHW", "OIHW", "NCHW"))
    conv = conv + bias[None, :, None, None]
    mean = jnp.mean(conv, axis=(0, 2, 3), keepdims=True)
    var = jnp.mean((conv - mean) ** 2, axis=(0, 2, 3), keepdims=True)
    y = (conv - mean) * lax.rsqrt(var + EPS)
    y = y * gamma[None, :, None, None] + beta[None, :, None, None]
    y = jnp.maximum(y, 0.0)
    pooled = lax.reduce_window(y, -jnp.inf, lax.max,
                               window_dimensions=(1, 1, 2, 2),
                               window_strides=(1, 1, 2, 2), padding="VALID")
    return pooled


# --------------------------------- main ------------------------------------ #

if __name__ == "__main__":
    N, Cin, Cout, H, W, K = 2, 4, 8, 16, 16, 3

    key = jax.random.PRNGKey(0)
    kx, kw, kb = jax.random.split(key, 3)

    x = jax.random.normal(kx, (N, Cin, H, W), dtype=jnp.float32)
    w = jax.random.normal(kw, (Cout, Cin, K, K), dtype=jnp.float32) * 0.1
    b = jax.random.normal(kb, (Cout,), dtype=jnp.float32) * 0.1
    gamma = jnp.ones((Cout,), dtype=jnp.float32)   # BN weight init
    beta = jnp.zeros((Cout,), dtype=jnp.float32)   # BN bias init

    out = conv_block_forward(x, w, b, gamma, beta)
    out = jax.block_until_ready(out)

    ref = conv_block_reference(x, w, b, gamma, beta)
    np.testing.assert_allclose(np.asarray(out), np.asarray(ref), rtol=1e-4, atol=1e-4)
    assert out.shape == (N, Cout, H // 2, W // 2)

    print("KERNEL_OK")
</pallas_src>

<mosaic_0001>
module attributes {stable_mosaic.version = 11 : i64} {
  func.func @_conv_stats_kernel(%arg0: i32, %arg1: memref<1x256x36xf32, #tpu.memory_space<vmem>>, %arg2: memref<36x128xf32, #tpu.memory_space<vmem>>, %arg3: memref<1x128xf32, #tpu.memory_space<vmem>>, %arg4: memref<1x256x128xf32, #tpu.memory_space<vmem>>, %arg5: memref<1x1x128xf32, #tpu.memory_space<vmem>>, %arg6: memref<1x1x128xf32, #tpu.memory_space<vmem>>) attributes {dimension_semantics = [#tpu.dimension_semantics<parallel>], iteration_bounds = array<i64: 2>, scalar_prefetch = 0 : i64, scratch_operands = 0 : i64, tpu.core_type = #tpu.core_type<tc>, window_params = [{transform_indices = @transform_0, window_bounds = array<i64: 1, 256, 36>}, {pipeline_mode = #tpu.pipeline_mode<synchronous>, transform_indices = @transform_1, window_bounds = array<i64: 36, 128>}, {pipeline_mode = #tpu.pipeline_mode<synchronous>, transform_indices = @transform_2, window_bounds = array<i64: 1, 128>}, {transform_indices = @transform_3, window_bounds = array<i64: 1, 256, 128>}, {transform_indices = @transform_4, window_bounds = array<i64: 1, 1, 128>}, {transform_indices = @transform_5, window_bounds = array<i64: 1, 1, 128>}]} {
    %c0 = arith.constant 0 : index
    %c0_0 = arith.constant 0 : index
    %c0_1 = arith.constant 0 : index
    %0 = vector.load %arg1[%c0, %c0_0, %c0_1] : memref<1x256x36xf32, #tpu.memory_space<vmem>>, vector<1x256x36xf32>
    %1 = vector.shape_cast %0 : vector<1x256x36xf32> to vector<256x36xf32>
    %c0_2 = arith.constant 0 : index
    %c0_3 = arith.constant 0 : index
    %2 = vector.load %arg2[%c0_2, %c0_3] : memref<36x128xf32, #tpu.memory_space<vmem>>, vector<36x128xf32>
    %cst = arith.constant dense<0.000000e+00> : vector<256x128xf32>
    %3 = tpu.matmul %1, %2, %cst {dimension_numbers = #tpu.dot_dimension_numbers<[1], [0], [0], [1], [0, 0, 1, 1], [], []>} : vector<256x36xf32>, vector<36x128xf32>, vector<256x128xf32> -> vector<256x128xf32>
    %c0_4 = arith.constant 0 : index
    %c0_5 = arith.constant 0 : index
    %4 = vector.load %arg3[%c0_4, %c0_5] : memref<1x128xf32, #tpu.memory_space<vmem>>, vector<1x128xf32>
    %5 = vector.broadcast %4 : vector<1x128xf32> to vector<256x128xf32>
    %6 = arith.addf %3, %5 : vector<256x128xf32>
    %c0_6 = arith.constant 0 : index
    %c0_7 = arith.constant 0 : index
    %c0_8 = arith.constant 0 : index
    %7 = vector.load %arg4[%c0_6, %c0_7, %c0_8] : memref<1x256x128xf32, #tpu.memory_space<vmem>>, vector<1x256x128xf32>
    %8 = vector.shape_cast %7 : vector<1x256x128xf32> to vector<256x128xf32>
    %9 = vector.shape_cast %6 : vector<256x128xf32> to vector<1x256x128xf32>
    tpu.vector_store %arg4[%c0_6, %c0_7, %c0_8], %9 {strides = array<i32>} : memref<1x256x128xf32, #tpu.memory_space<vmem>>, vector<1x256x128xf32>,
    %cst_9 = arith.constant dense<0.000000e+00> : vector<128xf32>
    %10 = vector.multi_reduction <add>, %6, %cst_9 [0] : vector<256x128xf32> to vector<128xf32>
    %11 = vector.shape_cast %10 : vector<128xf32> to vector<1x128xf32>
    %c0_10 = arith.constant 0 : index
    %c0_11 = arith.constant 0 : index
    %c0_12 = arith.constant 0 : index
    %12 = vector.load %arg5[%c0_10, %c0_11, %c0_12] : memref<1x1x128xf32, #tpu.memory_space<vmem>>, vector<1x1x128xf32>
    %13 = vector.shape_cast %12 : vector<1x1x128xf32> to vector<1x128xf32>
    %14 = vector.shape_cast %11 : vector<1x128xf32> to vector<1x1x128xf32>
    tpu.vector_store %arg5[%c0_10, %c0_11, %c0_12], %14 {strides = array<i32>} : memref<1x1x128xf32, #tpu.memory_space<vmem>>, vector<1x1x128xf32>,
    %15 = arith.mulf %6, %6 : vector<256x128xf32>
    %cst_13 = arith.constant dense<0.000000e+00> : vector<128xf32>
    %16 = vector.multi_reduction <add>, %15, %cst_13 [0] : vector<256x128xf32> to vector<128xf32>
    %17 = vector.shape_cast %16 : vector<128xf32> to vector<1x128xf32>
    %c0_14 = arith.constant 0 : index
    %c0_15 = arith.constant 0 : index
    %c0_16 = arith.constant 0 : index
    %18 = vector.load %arg6[%c0_14, %c0_15, %c0_16] : memref<1x1x128xf32, #tpu.memory_space<vmem>>, vector<1x1x128xf32>
    %19 = vector.shape_cast %18 : vector<1x1x128xf32> to vector<1x128xf32>
    %20 = vector.shape_cast %17 : vector<1x128xf32> to vector<1x1x128xf32>
    tpu.vector_store %arg6[%c0_14, %c0_15, %c0_16], %20 {strides = array<i32>} : memref<1x1x128xf32, #tpu.memory_space<vmem>>, vector<1x1x128xf32>,
    return
  }
  func.func @transform_0(%arg0: i32) -> (i32, i32, i32) {
    %c0_i32 = arith.constant 0 : i32
    %c0_i32_0 = arith.constant 0 : i32
    %c0_i32_1 = arith.constant 0 : i32
    return %arg0, %c0_i32, %c0_i32_0 : i32, i32, i32
  }
  func.func @transform_1(%arg0: i32) -> (i32, i32) {
    %c0_i32 = arith.constant 0 : i32
    %c0_i32_0 = arith.constant 0 : i32
    %c0_i32_1 = arith.constant 0 : i32
    return %c0_i32, %c0_i32_0 : i32, i32
  }
  func.func @transform_2(%arg0: i32) -> (i32, i32) {
    %c0_i32 = arith.constant 0 : i32
    %c0_i32_0 = arith.constant 0 : i32
    %c0_i32_1 = arith.constant 0 : i32
    return %c0_i32, %c0_i32_0 : i32, i32
  }
  func.func @transform_3(%arg0: i32) -> (i32, i32, i32) {
    %c0_i32 = arith.constant 0 : i32
    %c0_i32_0 = arith.constant 0 : i32
    %c0_i32_1 = arith.constant 0 : i32
    return %arg0, %c0_i32, %c0_i32_0 : i32, i32, i32
  }
  func.func @transform_4(%arg0: i32) -> (i32, i32, i32) {
    %c0_i32 = arith.constant 0 : i32
    %c0_i32_0 = arith.constant 0 : i32
    %c0_i32_1 = arith.constant 0 : i32
    return %arg0, %c0_i32, %c0_i32_0 : i32, i32, i32
  }
  func.func @transform_5(%arg0: i32) -> (i32, i32, i32) {
    %c0_i32 = arith.constant 0 : i32
    %c0_i32_0 = arith.constant 0 : i32
    %c0_i32_1 = arith.constant 0 : i32
    return %arg0, %c0_i32, %c0_i32_0 : i32, i32, i32
  }
}

module attributes {stable_mosaic.version = 11 : i64} {
  func.func @_bn_relu_pool_kernel(%arg0: i32, %arg1: memref<1x256x128xf32, #tpu.memory_space<vmem>>, %arg2: memref<1x128xf32, #tpu.memory_space<vmem>>, %arg3: memref<1x128xf32, #tpu.memory_space<vmem>>, %arg4: memref<1x64x128xf32, #tpu.memory_space<vmem>>) attributes {dimension_semantics = [#tpu.dimension_semantics<parallel>], iteration_bounds = array<i64: 2>, scalar_prefetch = 0 : i64, scratch_operands = 0 : i64, tpu.core_type = #tpu.core_type<tc>, window_params = [{transform_indices = @transform_0, window_bounds = array<i64: 1, 256, 128>}, {pipeline_mode = #tpu.pipeline_mode<synchronous>, transform_indices = @transform_1, window_bounds = array<i64: 1, 128>}, {pipeline_mode = #tpu.pipeline_mode<synchronous>, transform_indices = @transform_2, window_bounds = array<i64: 1, 128>}, {transform_indices = @transform_3, window_bounds = array<i64: 1, 64, 128>}]} {
    %c0 = arith.constant 0 : index
    %c0_0 = arith.constant 0 : index
    %c0_1 = arith.constant 0 : index
    %0 = vector.load %arg1[%c0, %c0_0, %c0_1] : memref<1x256x128xf32, #tpu.memory_space<vmem>>, vector<1x256x128xf32>
    %1 = vector.shape_cast %0 : vector<1x256x128xf32> to vector<256x128xf32>
    %c0_2 = arith.constant 0 : index
    %c0_3 = arith.constant 0 : index
    %2 = vector.load %arg2[%c0_2, %c0_3] : memref<1x128xf32, #tpu.memory_space<vmem>>, vector<1x128xf32>
    %3 = vector.broadcast %2 : vector<1x128xf32> to vector<256x128xf32>
    %4 = arith.mulf %1, %3 : vector<256x128xf32>
    %c0_4 = arith.constant 0 : index
    %c0_5 = arith.constant 0 : index
    %5 = vector.load %arg3[%c0_4, %c0_5] : memref<1x128xf32, #tpu.memory_space<vmem>>, vector<1x128xf32>
    %6 = vector.broadcast %5 : vector<1x128xf32> to vector<256x128xf32>
    %7 = arith.addf %4, %6 : vector<256x128xf32>
    %cst = arith.constant 0.000000e+00 : f32
    %8 = vector.broadcast %cst : f32 to vector<256x128xf32>
    %9 = arith.maximumf %7, %8 : vector<256x128xf32>
    %10 = vector.extract_strided_slice %9 {offsets = [0, 0], sizes = [64, 128], strides = [1, 1]} : vector<256x128xf32> to vector<64x128xf32>
    %11 = vector.extract_strided_slice %9 {offsets = [64, 0], sizes = [64, 128], strides = [1, 1]} : vector<256x128xf32> to vector<64x128xf32>
    %12 = arith.maximumf %10, %11 : vector<64x128xf32>
    %13 = vector.extract_strided_slice %9 {offsets = [128, 0], sizes = [64, 128], strides = [1, 1]} : vector<256x128xf32> to vector<64x128xf32>
    %14 = vector.extract_strided_slice %9 {offsets = [192, 0], sizes = [64, 128], strides = [1, 1]} : vector<256x128xf32> to vector<64x128xf32>
    %15 = arith.maximumf %13, %14 : vector<64x128xf32>
    %16 = arith.maximumf %12, %15 : vector<64x128xf32>
    %c0_6 = arith.constant 0 : index
    %c0_7 = arith.constant 0 : index
    %c0_8 = arith.constant 0 : index
    %17 = vector.load %arg4[%c0_6, %c0_7, %c0_8] : memref<1x64x128xf32, #tpu.memory_space<vmem>>, vector<1x64x128xf32>
    %18 = vector.shape_cast %17 : vector<1x64x128xf32> to vector<64x128xf32>
    %19 = vector.shape_cast %16 : vector<64x128xf32> to vector<1x64x128xf32>
    tpu.vector_store %arg4[%c0_6, %c0_7, %c0_8], %19 {strides = array<i32>} : memref<1x64x128xf32, #tpu.memory_space<vmem>>, vector<1x64x128xf32>,
    return
  }
  func.func @transform_0(%arg0: i32) -> (i32, i32, i32) {
    %c0_i32 = arith.constant 0 : i32
    %c0_i32_0 = arith.constant 0 : i32
    %c0_i32_1 = arith.constant 0 : i32
    return %arg0, %c0_i32, %c0_i32_0 : i32, i32, i32
  }
  func.func @transform_1(%arg0: i32) -> (i32, i32) {
    %c0_i32 = arith.constant 0 : i32
    %c0_i32_0 = arith.constant 0 : i32
    %c0_i32_1 = arith.constant 0 : i32
    return %c0_i32, %c0_i32_0 : i32, i32
  }
  func.func @transform_2(%arg0: i32) -> (i32, i32) {
    %c0_i32 = arith.constant 0 : i32
    %c0_i32_0 = arith.constant 0 : i32
    %c0_i32_1 = arith.constant 0 : i32
    return %c0_i32, %c0_i32_0 : i32, i32
  }
  func.func @transform_3(%arg0: i32) -> (i32, i32, i32) {
    %c0_i32 = arith.constant 0 : i32
    %c0_i32_0 = arith.constant 0 : i32
    %c0_i32_1 = arith.constant 0 : i32
    return %arg0, %c0_i32, %c0_i32_0 : i32, i32, i32
  }
}

</mosaic_0001>

<llo_original>
// kernel: conv_block_forward.3
$region0: #{conv_block_forward.3}
  #allocation0 [shape = 'u32[]', space=smem, size = 0x4, offset = 0x4, fixed_abs, tag = 'smem constant byte address 0x4 - core index']
  #allocation1 [shape = 'u32[144,128]{1,0:T(1,128)}', space=vmem, size = 0x12000, scoped, tag = 'internal scratch']
  %s0 = inlined_call_operand.vmem [shape: f32[2,256,128], index: 0, kind: input, shape index: {}]
  %s1 = inlined_call_operand.vmem [shape: f32[1,128], index: 1, kind: input, shape index: {}]
  %s2 = inlined_call_operand.vmem [shape: f32[1,128], index: 2, kind: input, shape index: {}]
  %s3 = inlined_call_operand.vmem [shape: f32[2,64,128], index: 3, kind: output, shape index: {}]
  %s4 = sld [smem:[#allocation0]]
  $region45: #{conv_block_forward.3} parent=0
    _
  %s6 = ssub.s32 1, %s4
  %s7 = scalar_select 0, %s6, %s4
  loop: start=0, step=1, limit=4
  $region2: #{conv_block_forward.3} parent=0 // loop_pre_header
    _
  $region3: #{conv_block_forward.3} parent=0 // loop_header
    %s9 = sphi 0, %s13
    %p10 = scmp.ge.s32.totalorder %s9, 4
    %s19 = sphi 0, %s21
    %s22 = sphi 0, %s19
    %s23 = sphi 0, %s22
    %s39 = sphi 0, %s23
    %s43 = sphi 0, %s43
    %s45 = sphi 0, %s43
    %s46 = sphi 0, %s45
    %s60 = sphi 0, %s46
    %s64 = sphi 0, %s64
    %s66 = sphi 0, %s64
    %s67 = sphi 0, %s66
    %s81 = sphi 0, %s67
    %s87 = sphi 0, %s89
    %s90 = sphi 0, %s87
    %s91 = sphi 0, %s90
    %s107 = sphi 0, %s91
  $region4: #{conv_block_forward.3} parent=0 // loop_header_branch
    %12 = sbr.rel (%p10) target = $region8
  $region5: #{conv_block_forward.3} parent=0 // loop_body
    %s14 = ssub.s32 %s9, 1
    %s15 = ssub.s32 %s9, 2
    %s16 = sadd.s32 %s9, 1
    %s17 = ssub.s32 %s9, %s16
    %p18 = scmp.eq.s32.totalorder %s17, 0
    %s20 = sadd.s32 %s19, 1
    %s21 = scalar_select %p18, %s19, %s20
    %p24 = pneg %p18
    %p25 = scmp.eq.s32.totalorder %s9, 1
    %p26 = por %p24, %p25
    %p27 = scmp.ne.s32.totalorder %s19, %s22
    %p28 = scmp.eq.s32.totalorder %s9, 0
    %p29 = por %p27, %p28
    %p30 = scmp.ne.s32.totalorder %s19, %s22
    %p31 = scmp.eq.s32.totalorder %s14, 1
    %p32 = por %p30, %p31
    %p33 = scmp.ne.s32.totalorder %s22, %s23
    %p34 = scmp.eq.s32.totalorder %s14, 0
    %p35 = por %p33, %p34
    %p36 = scmp.ne.s32.totalorder %s22, %s23
    %p37 = scmp.eq.s32.totalorder %s15, 1
    %p38 = por %p36, %p37
    %p40 = scmp.ne.s32.totalorder %s23, %s39
    %p41 = scmp.eq.s32.totalorder %s15, 0
    %p42 = por %p40, %p41
    %s44 = sadd.s32 %s43, 1
    %p47 = scmp.eq.s32.totalorder %s9, 1
    %p48 = scmp.ne.s32.totalorder %s43, %s45
    %p49 = scmp.eq.s32.totalorder %s9, 0
    %p50 = por %p48, %p49
    %p51 = scmp.ne.s32.totalorder %s43, %s45
    %p52 = scmp.eq.s32.totalorder %s14, 1
    %p53 = por %p51, %p52
    %p54 = scmp.ne.s32.totalorder %s45, %s46
    %p55 = scmp.eq.s32.totalorder %s14, 0
    %p56 = por %p54, %p55
    %p57 = scmp.ne.s32.totalorder %s45, %s46
    %p58 = scmp.eq.s32.totalorder %s15, 1
    %p59 = por %p57, %p58
    %p61 = scmp.ne.s32.totalorder %s46, %s60
    %p62 = scmp.eq.s32.totalorder %s15, 0
    %p63 = por %p61, %p62
    %s65 = sadd.s32 %s64, 1
    %p68 = scmp.eq.s32.totalorder %s9, 1
    %p69 = scmp.ne.s32.totalorder %s64, %s66
    %p70 = scmp.eq.s32.totalorder %s9, 0
    %p71 = por %p69, %p70
    %p72 = scmp.ne.s32.totalorder %s64, %s66
    %p73 = scmp.eq.s32.totalorder %s14, 1
    %p74 = por %p72, %p73
    %p75 = scmp.ne.s32.totalorder %s66, %s67
    %p76 = scmp.eq.s32.totalorder %s14, 0
    %p77 = por %p75, %p76
    %p78 = scmp.ne.s32.totalorder %s66, %s67
    %p79 = scmp.eq.s32.totalorder %s15, 1
    %p80 = por %p78, %p79
    %p82 = scmp.ne.s32.totalorder %s67, %s81
    %p83 = scmp.eq.s32.totalorder %s15, 0
    %p84 = por %p82, %p83
    %s85 = ssub.s32 %s9, %s16
    %p86 = scmp.eq.s32.totalorder %s85, 0
    %s88 = sadd.s32 %s87, 1
    %s89 = scalar_select %p86, %s87, %s88
    %p92 = pneg %p86
    %p93 = scmp.eq.s32.totalorder %s9, 1
    %p94 = por %p92, %p93
    %p95 = scmp.ne.s32.totalorder %s87, %s90
    %p96 = scmp.eq.s32.totalorder %s9, 0
    %p97 = por %p95, %p96
    %p98 = scmp.ne.s32.totalorder %s87, %s90
    %p99 = scmp.eq.s32.totalorder %s14, 1
    %p100 = por %p98, %p99
    %p101 = scmp.ne.s32.totalorder %s90, %s91
    %p102 = scmp.eq.s32.totalorder %s14, 0
    %p103 = por %p101, %p102
    %p104 = scmp.ne.s32.totalorder %s90, %s91
    %p105 = scmp.eq.s32.totalorder %s15, 1
    %p106 = por %p104, %p105
    %p108 = scmp.ne.s32.totalorder %s91, %s107
    %p109 = scmp.eq.s32.totalorder %s15, 0
    %p110 = por %p108, %p109
    %p111 = scmp.le.s32.totalorder 1, %s9
    %p112 = scmp.lt.s32.totalorder %s9, 3
    %p113 = pnand %p111, %p112
    %p114 = pneg %p113
    // Predicated region
    $region9: #{conv_block_forward.3} parent=5 // pred_check
      _
    $region10: #{conv_block_forward.3} parent=5 // pred_check_branch
      %116 = sbr.rel (%p113) target = $region12
    $region11: #{conv_block_forward.3} parent=5 // pred_region
      %s117 = ssub.s32 %s9, 1
      // Predicated region
      $region13: #{conv_block_forward.3} parent=11 // pred_check
        %p118 = pneg %p56
      $region14: #{conv_block_forward.3} parent=11 // pred_check_branch
        %120 = sbr.rel (%p118) target = $region16
      $region15: #{conv_block_forward.3} parent=11 // pred_region
        _
      $region16: #{conv_block_forward.3} parent=11 // pred_fallthru
        _
      // Predicated region
      $region17: #{conv_block_forward.3} parent=11 // pred_check
        %p121 = pneg %p77
      $region18: #{conv_block_forward.3} parent=11 // pred_check_branch
        %123 = sbr.rel (%p121) target = $region20
      $region19: #{conv_block_forward.3} parent=11 // pred_region
        _
      $region20: #{conv_block_forward.3} parent=11 // pred_fallthru
        _
    $region12: #{conv_block_forward.3} parent=5 // pred_fallthru
      _
    %p124 = scmp.lt.s32.totalorder %s9, 2
    // Predicated region
    $region21: #{conv_block_forward.3} parent=5 // pred_check
      %p125 = pneg %p124
    $region22: #{conv_block_forward.3} parent=5 // pred_check_branch
      %127 = sbr.rel (%p125) target = $region24
    $region23: #{conv_block_forward.3} parent=5 // pred_region
      // Predicated region
      $region25: #{conv_block_forward.3} parent=23 // pred_check
        %p128 = pneg %p29
      $region26: #{conv_block_forward.3} parent=23 // pred_check_branch
        %130 = sbr.rel (%p128) target = $region28
      $region27: #{conv_block_forward.3} parent=23 // pred_region
        %p131 = scmp.lt.s32.totalorder %s9, 1
        %s132 = scalar_select %p131, %s9, 1
        %s133 = smul.addr %s132, 32
        %s134 = smul.addr %s133, 8
        %s135 = scalar_lea.vmem %s0, %s134
      $region28: #{conv_block_forward.3} parent=23 // pred_fallthru
        _
    $region24: #{conv_block_forward.3} parent=5 // pred_fallthru
      _
    %p136 = scmp.le.s32.totalorder 1, %s9
    %p137 = scmp.lt.s32.totalorder %s9, 3
    %p138 = pnand %p136, %p137
    %p139 = pneg %p138
    // Predicated region
    $region29: #{conv_block_forward.3} parent=5 // pred_check
      _
    $region30: #{conv_block_forward.3} parent=5 // pred_check_branch
      %141 = sbr.rel (%p138) target = $region32
    $region31: #{conv_block_forward.3} parent=5 // pred_region
      %s142 = ssub.s32 %s9, 1
      %p143 = scmp.lt.s32.totalorder %s14, 1
      %s144 = scalar_select %p143, %s14, 1
      %s145 = smul.addr %s144, 32
      %s146 = smul.addr %s145, 8
      %s147 = scalar_lea.vmem %s0, %s146
      %p148 = pneg %p35
      %p149 = pneg %p32
      %p150 = pneg %p56
      %p151 = pneg %p53
      %p152 = pneg %p77
      %p153 = pneg %p74
      %p154 = pneg %p103
      %p155 = pneg %p100
      %p156 = scmp.lt.s32.totalorder %s14, 1
      %s157 = scalar_select %p156, %s14, 1
      %s158 = smul.addr %s157, 8
      %s159 = smul.addr %s158, 8
      %s160 = scalar_lea.vmem %s3, %s159
      %p161 = scmp.lt.s32.totalorder %s14, 1
      %s162 = scalar_select %p161, %s14, 1
      %s163 = smul.addr %s162, 32
      %s164 = smul.addr %s163, 8
      %s165 = scalar_lea.vmem %s0, %s164
      %p166 = scmp.lt.s32.totalorder %s14, 1
      %s167 = scalar_select %p166, %s14, 1
      %s168 = smul.addr %s167, 8
      %s169 = smul.addr %s168, 8
      %s170 = scalar_lea.vmem %s3, %s169
      %v171 = vld [vmem:[%s165] sm:$0xff]
      %v172 = vld [vmem:[%s165 + $0x8] sm:$0xff]
      %v173 = vld [vmem:[%s165 + $0x10] sm:$0xff]
      %v174 = vld [vmem:[%s165 + $0x18] sm:$0xff]
      %v175 = vld [vmem:[%s165 + $0x20] sm:$0xff]
      %v176 = vld [vmem:[%s165 + $0x28] sm:$0xff]
      %v177 = vld [vmem:[%s165 + $0x30] sm:$0xff]
      %v178 = vld [vmem:[%s165 + $0x38] sm:$0xff]
      %v179 = vld [vmem:[%s165 + $0x40] sm:$0xff]
      %v180 = vld [vmem:[%s165 + $0x48] sm:$0xff]
      %v181 = vld [vmem:[%s165 + $0x50] sm:$0xff]
      %v182 = vld [vmem:[%s165 + $0x58] sm:$0xff]
      %v183 = vld [vmem:[%s165 + $0x60] sm:$0xff]
      %v184 = vld [vmem:[%s165 + $0x68] sm:$0xff]
      %v185 = vld [vmem:[%s165 + $0x70] sm:$0xff]
      %v186 = vld [vmem:[%s165 + $0x78] sm:$0xff]
      %v187 = vld [vmem:[%s165 + $0x80] sm:$0xff]
      %v188 = vld [vmem:[%s165 + $0x88] sm:$0xff]
      %v189 = vld [vmem:[%s165 + $0x90] sm:$0xff]
      %v190 = vld [vmem:[%s165 + $0x98] sm:$0xff]
      %v191 = vld [vmem:[%s165 + $0xa0] sm:$0xff]
      %v192 = vld [vmem:[%s165 + $0xa8] sm:$0xff]
      %v193 = vld [vmem:[%s165 + $0xb0] sm:$0xff]
      %v194 = vld [vmem:[%s165 + $0xb8] sm:$0xff]
      %v195 = vld [vmem:[%s165 + $0xc0] sm:$0xff]
      %v196 = vld [vmem:[%s165 + $0xc8] sm:$0xff]
      %v197 = vld [vmem:[%s165 + $0xd0] sm:$0xff]
      %v198 = vld [vmem:[%s165 + $0xd8] sm:$0xff]
      %v199 = vld [vmem:[%s165 + $0xe0] sm:$0xff]
      %v200 = vld [vmem:[%s165 + $0xe8] sm:$0xff]
      %v201 = vld [vmem:[%s165 + $0xf0] sm:$0xff]
      %v202 = vld [vmem:[%s165 + $0xf8] sm:$0xff]
      %v203 = vld [vmem:[%s1] sm:$0x1]
      %v205 = vlaneseq
      %v206 = vshrl.u32 %v205, 7
      %v207 = vsub.s32 0, %v206
      %v208 = vrot.slane %v203, %v207
      %v210 = vmul.f32 %v171, %v208
      %v211 = vmul.f32 %v172, %v208
      %v212 = vmul.f32 %v173, %v208
      %v213 = vmul.f32 %v174, %v208
      %v214 = vmul.f32 %v175, %v208
      %v215 = vmul.f32 %v176, %v208
      %v216 = vmul.f32 %v177, %v208
      %v217 = vmul.f32 %v178, %v208
      %v218 = vmul.f32 %v179, %v208
      %v219 = vmul.f32 %v180, %v208
      %v220 = vmul.f32 %v181, %v208
      %v221 = vmul.f32 %v182, %v208
      %v222 = vmul.f32 %v183, %v208
      %v223 = vmul.f32 %v184, %v208
      %v224 = vmul.f32 %v185, %v208
      %v225 = vmul.f32 %v186, %v208
      %v226 = vmul.f32 %v187, %v208
      %v227 = vmul.f32 %v188, %v208
      %v228 = vmul.f32 %v189, %v208
      %v229 = vmul.f32 %v190, %v208
      %v230 = vmul.f32 %v191, %v208
      %v231 = vmul.f32 %v192, %v208
      %v232 = vmul.f32 %v193, %v208
      %v233 = vmul.f32 %v194, %v208
      %v234 = vmul.f32 %v195, %v208
      %v235 = vmul.f32 %v196, %v208
      %v236 = vmul.f32 %v197, %v208
      %v237 = vmul.f32 %v198, %v208
      %v238 = vmul.f32 %v199, %v208
      %v239 = vmul.f32 %v200, %v208
      %v240 = vmul.f32 %v201, %v208
      %v241 = vmul.f32 %v202, %v208
      %v242 = vld [vmem:[%s2] sm:$0x1]
      %v244 = vlaneseq
      %v245 = vshrl.u32 %v244, 7
      %v246 = vsub.s32 0, %v245
      %v247 = vrot.slane %v242, %v246
      %v249 = vadd.f32 %v210, %v247
      %v250 = vadd.f32 %v211, %v247
      %v251 = vadd.f32 %v212, %v247
      %v252 = vadd.f32 %v213, %v247
      %v253 = vadd.f32 %v214, %v247
      %v254 = vadd.f32 %v215, %v247
      %v255 = vadd.f32 %v216, %v247
      %v256 = vadd.f32 %v217, %v247
      %v257 = vadd.f32 %v218, %v247
      %v258 = vadd.f32 %v219, %v247
      %v259 = vadd.f32 %v220, %v247
      %v260 = vadd.f32 %v221, %v247
      %v261 = vadd.f32 %v222, %v247
      %v262 = vadd.f32 %v223, %v247
      %v263 = vadd.f32 %v224, %v247
      %v264 = vadd.f32 %v225, %v247
      %v265 = vadd.f32 %v226, %v247
      %v266 = vadd.f32 %v227, %v247
      %v267 = vadd.f32 %v228, %v247
      %v268 = vadd.f32 %v229, %v247
      %v269 = vadd.f32 %v230, %v247
      %v270 = vadd.f32 %v231, %v247
      %v271 = vadd.f32 %v232, %v247
      %v272 = vadd.f32 %v233, %v247
      %v273 = vadd.f32 %v234, %v247
      %v274 = vadd.f32 %v235, %v247
      %v275 = vadd.f32 %v236, %v247
      %v276 = vadd.f32 %v237, %v247
      %v277 = vadd.f32 %v238, %v247
      %v278 = vadd.f32 %v239, %v247
      %v279 = vadd.f32 %v240, %v247
      %v280 = vadd.f32 %v241, %v247
      %v281 = vmax.f32 %v249, 0.0
      %v282 = vmax.f32 %v250, 0.0
      %v283 = vmax.f32 %v251, 0.0
      %v284 = vmax.f32 %v252, 0.0
      %v285 = vmax.f32 %v253, 0.0
      %v286 = vmax.f32 %v254, 0.0
      %v287 = vmax.f32 %v255, 0.0
      %v288 = vmax.f32 %v256, 0.0
      %v289 = vmax.f32 %v257, 0.0
      %v290 = vmax.f32 %v258, 0.0
      %v291 = vmax.f32 %v259, 0.0
      %v292 = vmax.f32 %v260, 0.0
      %v293 = vmax.f32 %v261, 0.0
      %v294 = vmax.f32 %v262, 0.0
      %v295 = vmax.f32 %v263, 0.0
      %v296 = vmax.f32 %v264, 0.0
      %v297 = vmax.f32 %v265, 0.0
      %v298 = vmax.f32 %v266, 0.0
      %v299 = vmax.f32 %v267, 0.0
      %v300 = vmax.f32 %v268, 0.0
      %v301 = vmax.f32 %v269, 0.0
      %v302 = vmax.f32 %v270, 0.0
      %v303 = vmax.f32 %v271, 0.0
      %v304 = vmax.f32 %v272, 0.0
      %v305 = vmax.f32 %v273, 0.0
      %v306 = vmax.f32 %v274, 0.0
      %v307 = vmax.f32 %v275, 0.0
      %v308 = vmax.f32 %v276, 0.0
      %v309 = vmax.f32 %v277, 0.0
      %v310 = vmax.f32 %v278, 0.0
      %v311 = vmax.f32 %v279, 0.0
      %v312 = vmax.f32 %v280, 0.0
      %v313 = vmax.f32 %v281, %v289
      %v314 = vmax.f32 %v282, %v290
      %v315 = vmax.f32 %v283, %v291
      %v316 = vmax.f32 %v284, %v292
      %v317 = vmax.f32 %v285, %v293
      %v318 = vmax.f32 %v286, %v294
      %v319 = vmax.f32 %v287, %v295
      %v320 = vmax.f32 %v288, %v296
      %v321 = vmax.f32 %v297, %v305
      %v322 = vmax.f32 %v298, %v306
      %v323 = vmax.f32 %v299, %v307
      %v324 = vmax.f32 %v300, %v308
      %v325 = vmax.f32 %v301, %v309
      %v326 = vmax.f32 %v302, %v310
      %v327 = vmax.f32 %v303, %v311
      %v328 = vmax.f32 %v304, %v312
      %v329 = vmax.f32 %v313, %v321
      %v330 = vmax.f32 %v314, %v322
      %v331 = vmax.f32 %v315, %v323
      %v332 = vmax.f32 %v316, %v324
      %v333 = vmax.f32 %v317, %v325
      %v334 = vmax.f32 %v318, %v326
      %v335 = vmax.f32 %v319, %v327
      %v336 = vmax.f32 %v320, %v328
      %337 = vst [vmem:[%s170] sm:$0xff] %v329
      %338 = vst [vmem:[%s170 + $0x8] sm:$0xff] %v330
      %339 = vst [vmem:[%s170 + $0x10] sm:$0xff] %v331
      %340 = vst [vmem:[%s170 + $0x18] sm:$0xff] %v332
      %341 = vst [vmem:[%s170 + $0x20] sm:$0xff] %v333
      %342 = vst [vmem:[%s170 + $0x28] sm:$0xff] %v334
      %343 = vst [vmem:[%s170 + $0x30] sm:$0xff] %v335
      %344 = vst [vmem:[%s170 + $0x38] sm:$0xff] %v336
      %p345 = scmp.lt.s32.totalorder %s14, 1
      %s346 = scalar_select %p345, %s14, 1
      %s347 = smul.addr %s346, 8
      %s348 = smul.addr %s347, 8
      %s349 = scalar_lea.vmem %s3, %s348
      // Predicated region
      $region33: #{conv_block_forward.3} parent=31 // pred_check
        %p350 = pneg %p100
      $region34: #{conv_block_forward.3} parent=31 // pred_check_branch
        %352 = sbr.rel (%p350) target = $region36
      $region35: #{conv_block_forward.3} parent=31 // pred_region
        _
      $region36: #{conv_block_forward.3} parent=31 // pred_fallthru
        _
    $region32: #{conv_block_forward.3} parent=5 // pred_fallthru
      _
    %p353 = scmp.le.s32.totalorder 2, %s9
    // Predicated region
    $region37: #{conv_block_forward.3} parent=5 // pred_check
      %p354 = pneg %p353
    $region38: #{conv_block_forward.3} parent=5 // pred_check_branch
      %356 = sbr.rel (%p354) target = $region40
    $region39: #{conv_block_forward.3} parent=5 // pred_region
      %s357 = ssub.s32 %s9, 2
      // Predicated region
      $region41: #{conv_block_forward.3} parent=39 // pred_check
        %p358 = pneg %p106
      $region42: #{conv_block_forward.3} parent=39 // pred_check_branch
        %360 = sbr.rel (%p358) target = $region44
      $region43: #{conv_block_forward.3} parent=39 // pred_region
        %p361 = scmp.lt.s32.totalorder %s15, 1
        %s362 = scalar_select %p361, %s15, 1
        %s363 = smul.addr %s362, 8
        %s364 = smul.addr %s363, 8
        %s365 = scalar_lea.vmem %s3, %s364
      $region44: #{conv_block_forward.3} parent=39 // pred_fallthru
        _
    $region40: #{conv_block_forward.3} parent=5 // pred_fallthru
      _
  $region6: #{conv_block_forward.3} parent=0 // loop_footer
    %s13 = sadd.s32 1, %s9
  $region7: #{conv_block_forward.3} parent=0 // loop_footer_branch
    %8 = sbr.rel target = $region3
  $region8: #{conv_block_forward.3} parent=0 // loop_exit
    _

// kernel: conv_block_forward.2
$region0: #{conv_block_forward.2}
  #allocation0 [shape = 'u32[]', space=smem, size = 0x4, offset = 0x4, fixed_abs, tag = 'smem constant byte address 0x4 - core index']
  #allocation1 [shape = 'u32[144,128]{1,0:T(1,128)}', space=vmem, size = 0x12000, scoped, tag = 'internal scratch']
  %s0 = inlined_call_operand.vmem [shape: f32[2,256,36], index: 0, kind: input, shape index: {}]
  %s1 = inlined_call_operand.vmem [shape: f32[36,128], index: 1, kind: input, shape index: {}]
  %s2 = inlined_call_operand.vmem [shape: f32[1,128], index: 2, kind: input, shape index: {}]
  %s3 = inlined_call_operand.vmem [shape: f32[2,256,128], index: 3, kind: output, shape index: {0}]
  %s4 = inlined_call_operand.vmem [shape: f32[2,1,128], index: 4, kind: output, shape index: {1}]
  %s5 = inlined_call_operand.vmem [shape: f32[2,1,128], index: 5, kind: output, shape index: {2}]
  %6 = xla_tuple %s3, %s4, %s5
  %s7 = sld [smem:[#allocation0]]
  $region61: #{conv_block_forward.2} parent=0
    _
  %s9 = ssub.s32 1, %s7
  %s10 = scalar_select 0, %s9, %s7
  loop: start=0, step=1, limit=4
  $region2: #{conv_block_forward.2} parent=0 // loop_pre_header
    _
  $region3: #{conv_block_forward.2} parent=0 // loop_header
    %s12 = sphi 0, %s16
    %p13 = scmp.ge.s32.totalorder %s12, 4
    %s22 = sphi 0, %s24
    %s25 = sphi 0, %s22
    %s26 = sphi 0, %s25
    %s42 = sphi 0, %s26
    %s46 = sphi 0, %s46
    %s48 = sphi 0, %s46
    %s49 = sphi 0, %s48
    %s63 = sphi 0, %s49
    %s67 = sphi 0, %s67
    %s69 = sphi 0, %s67
    %s70 = sphi 0, %s69
    %s84 = sphi 0, %s70
    %s90 = sphi 0, %s92
    %s93 = sphi 0, %s90
    %s94 = sphi 0, %s93
    %s110 = sphi 0, %s94
    %s116 = sphi 0, %s118
    %s119 = sphi 0, %s116
    %s120 = sphi 0, %s119
    %s136 = sphi 0, %s120
    %s142 = sphi 0, %s144
    %s145 = sphi 0, %s142
    %s146 = sphi 0, %s145
    %s162 = sphi 0, %s146
  $region4: #{conv_block_forward.2} parent=0 // loop_header_branch
    %15 = sbr.rel (%p13) target = $region8
  $region5: #{conv_block_forward.2} parent=0 // loop_body
    %s17 = ssub.s32 %s12, 1
    %s18 = ssub.s32 %s12, 2
    %s19 = sadd.s32 %s12, 1
    %s20 = ssub.s32 %s12, %s19
    %p21 = scmp.eq.s32.totalorder %s20, 0
    %s23 = sadd.s32 %s22, 1
    %s24 = scalar_select %p21, %s22, %s23
    %p27 = pneg %p21
    %p28 = scmp.eq.s32.totalorder %s12, 1
    %p29 = por %p27, %p28
    %p30 = scmp.ne.s32.totalorder %s22, %s25
    %p31 = scmp.eq.s32.totalorder %s12, 0
    %p32 = por %p30, %p31
    %p33 = scmp.ne.s32.totalorder %s22, %s25
    %p34 = scmp.eq.s32.totalorder %s17, 1
    %p35 = por %p33, %p34
    %p36 = scmp.ne.s32.totalorder %s25, %s26
    %p37 = scmp.eq.s32.totalorder %s17, 0
    %p38 = por %p36, %p37
    %p39 = scmp.ne.s32.totalorder %s25, %s26
    %p40 = scmp.eq.s32.totalorder %s18, 1
    %p41 = por %p39, %p40
    %p43 = scmp.ne.s32.totalorder %s26, %s42
    %p44 = scmp.eq.s32.totalorder %s18, 0
    %p45 = por %p43, %p44
    %s47 = sadd.s32 %s46, 1
    %p50 = scmp.eq.s32.totalorder %s12, 1
    %p51 = scmp.ne.s32.totalorder %s46, %s48
    %p52 = scmp.eq.s32.totalorder %s12, 0
    %p53 = por %p51, %p52
    %p54 = scmp.ne.s32.totalorder %s46, %s48
    %p55 = scmp.eq.s32.totalorder %s17, 1
    %p56 = por %p54, %p55
    %p57 = scmp.ne.s32.totalorder %s48, %s49
    %p58 = scmp.eq.s32.totalorder %s17, 0
    %p59 = por %p57, %p58
    %p60 = scmp.ne.s32.totalorder %s48, %s49
    %p61 = scmp.eq.s32.totalorder %s18, 1
    %p62 = por %p60, %p61
    %p64 = scmp.ne.s32.totalorder %s49, %s63
    %p65 = scmp.eq.s32.totalorder %s18, 0
    %p66 = por %p64, %p65
    %s68 = sadd.s32 %s67, 1
    %p71 = scmp.eq.s32.totalorder %s12, 1
    %p72 = scmp.ne.s32.totalorder %s67, %s69
    %p73 = scmp.eq.s32.totalorder %s12, 0
    %p74 = por %p72, %p73
    %p75 = scmp.ne.s32.totalorder %s67, %s69
    %p76 = scmp.eq.s32.totalorder %s17, 1
    %p77 = por %p75, %p76
    %p78 = scmp.ne.s32.totalorder %s69, %s70
    %p79 = scmp.eq.s32.totalorder %s17, 0
    %p80 = por %p78, %p79
    %p81 = scmp.ne.s32.totalorder %s69, %s70
    %p82 = scmp.eq.s32.totalorder %s18, 1
    %p83 = por %p81, %p82
    %p85 = scmp.ne.s32.totalorder %s70, %s84
    %p86 = scmp.eq.s32.totalorder %s18, 0
    %p87 = por %p85, %p86
    %s88 = ssub.s32 %s12, %s19
    %p89 = scmp.eq.s32.totalorder %s88, 0
    %s91 = sadd.s32 %s90, 1
    %s92 = scalar_select %p89, %s90, %s91
    %p95 = pneg %p89
    %p96 = scmp.eq.s32.totalorder %s12, 1
    %p97 = por %p95, %p96
    %p98 = scmp.ne.s32.totalorder %s90, %s93
    %p99 = scmp.eq.s32.totalorder %s12, 0
    %p100 = por %p98, %p99
    %p101 = scmp.ne.s32.totalorder %s90, %s93
    %p102 = scmp.eq.s32.totalorder %s17, 1
    %p103 = por %p101, %p102
    %p104 = scmp.ne.s32.totalorder %s93, %s94
    %p105 = scmp.eq.s32.totalorder %s17, 0
    %p106 = por %p104, %p105
    %p107 = scmp.ne.s32.totalorder %s93, %s94
    %p108 = scmp.eq.s32.totalorder %s18, 1
    %p109 = por %p107, %p108
    %p111 = scmp.ne.s32.totalorder %s94, %s110
    %p112 = scmp.eq.s32.totalorder %s18, 0
    %p113 = por %p111, %p112
    %s114 = ssub.s32 %s12, %s19
    %p115 = scmp.eq.s32.totalorder %s114, 0
    %s117 = sadd.s32 %s116, 1
    %s118 = scalar_select %p115, %s116, %s117
    %p121 = pneg %p115
    %p122 = scmp.eq.s32.totalorder %s12, 1
    %p123 = por %p121, %p122
    %p124 = scmp.ne.s32.totalorder %s116, %s119
    %p125 = scmp.eq.s32.totalorder %s12, 0
    %p126 = por %p124, %p125
    %p127 = scmp.ne.s32.totalorder %s116, %s119
    %p128 = scmp.eq.s32.totalorder %s17, 1
    %p129 = por %p127, %p128
    %p130 = scmp.ne.s32.totalorder %s119, %s120
    %p131 = scmp.eq.s32.totalorder %s17, 0
    %p132 = por %p130, %p131
    %p133 = scmp.ne.s32.totalorder %s119, %s120
    %p134 = scmp.eq.s32.totalorder %s18, 1
    %p135 = por %p133, %p134
    %p137 = scmp.ne.s32.totalorder %s120, %s136
    %p138 = scmp.eq.s32.totalorder %s18, 0
    %p139 = por %p137, %p138
    %s140 = ssub.s32 %s12, %s19
    %p141 = scmp.eq.s32.totalorder %s140, 0
    %s143 = sadd.s32 %s142, 1
    %s144 = scalar_select %p141, %s142, %s143
    %p147 = pneg %p141
    %p148 = scmp.eq.s32.totalorder %s12, 1
    %p149 = por %p147, %p148
    %p150 = scmp.ne.s32.totalorder %s142, %s145
    %p151 = scmp.eq.s32.totalorder %s12, 0
    %p152 = por %p150, %p151
    %p153 = scmp.ne.s32.totalorder %s142, %s145
    %p154 = scmp.eq.s32.totalorder %s17, 1
    %p155 = por %p153, %p154
    %p156 = scmp.ne.s32.totalorder %s145, %s146
    %p157 = scmp.eq.s32.totalorder %s17, 0
    %p158 = por %p156, %p157
    %p159 = scmp.ne.s32.totalorder %s145, %s146
    %p160 = scmp.eq.s32.totalorder %s18, 1
    %p161 = por %p159, %p160
    %p163 = scmp.ne.s32.totalorder %s146, %s162
    %p164 = scmp.eq.s32.totalorder %s18, 0
    %p165 = por %p163, %p164
    %p166 = scmp.le.s32.totalorder 1, %s12
    %p167 = scmp.lt.s32.totalorder %s12, 3
    %p168 = pnand %p166, %p167
    %p169 = pneg %p168
    // Predicated region
    $region9: #{conv_block_forward.2} parent=5 // pred_check
      _
    $region10: #{conv_block_forward.2} parent=5 // pred_check_branch
      %171 = sbr.rel (%p168) target = $region12
    $region11: #{conv_block_forward.2} parent=5 // pred_region
      %s172 = ssub.s32 %s12, 1
      // Predicated region
      $region13: #{conv_block_forward.2} parent=11 // pred_check
        %p173 = pneg %p59
      $region14: #{conv_block_forward.2} parent=11 // pred_check_branch
        %175 = sbr.rel (%p173) target = $region16
      $region15: #{conv_block_forward.2} parent=11 // pred_region
        _
      $region16: #{conv_block_forward.2} parent=11 // pred_fallthru
        _
      // Predicated region
      $region17: #{conv_block_forward.2} parent=11 // pred_check
        %p176 = pneg %p80
      $region18: #{conv_block_forward.2} parent=11 // pred_check_branch
        %178 = sbr.rel (%p176) target = $region20
      $region19: #{conv_block_forward.2} parent=11 // pred_region
        _
      $region20: #{conv_block_forward.2} parent=11 // pred_fallthru
        _
    $region12: #{conv_block_forward.2} parent=5 // pred_fallthru
      _
    %p179 = scmp.lt.s32.totalorder %s12, 2
    // Predicated region
    $region21: #{conv_block_forward.2} parent=5 // pred_check
      %p180 = pneg %p179
    $region22: #{conv_block_forward.2} parent=5 // pred_check_branch
      %182 = sbr.rel (%p180) target = $region24
    $region23: #{conv_block_forward.2} parent=5 // pred_region
      // Predicated region
      $region25: #{conv_block_forward.2} parent=23 // pred_check
        %p183 = pneg %p32
      $region26: #{conv_block_forward.2} parent=23 // pred_check_branch
        %185 = sbr.rel (%p183) target = $region28
      $region27: #{conv_block_forward.2} parent=23 // pred_region
        %p186 = scmp.lt.s32.totalorder %s12, 1
        %s187 = scalar_select %p186, %s12, 1
        %s188 = smul.addr %s187, 32
        %s189 = smul.addr %s188, 8
        %s190 = scalar_lea.vmem %s0, %s189
      $region28: #{conv_block_forward.2} parent=23 // pred_fallthru
        _
    $region24: #{conv_block_forward.2} parent=5 // pred_fallthru
      _
    %p191 = scmp.le.s32.totalorder 1, %s12
    %p192 = scmp.lt.s32.totalorder %s12, 3
    %p193 = pnand %p191, %p192
    %p194 = pneg %p193
    // Predicated region
    $region29: #{conv_block_forward.2} parent=5 // pred_check
      _
    $region30: #{conv_block_forward.2} parent=5 // pred_check_branch
      %196 = sbr.rel (%p193) target = $region32
    $region31: #{conv_block_forward.2} parent=5 // pred_region
      %s197 = ssub.s32 %s12, 1
      %p198 = scmp.lt.s32.totalorder %s17, 1
      %s199 = scalar_select %p198, %s17, 1
      %s200 = smul.addr %s199, 32
      %s201 = smul.addr %s200, 8
      %s202 = scalar_lea.vmem %s0, %s201
      %p203 = pneg %p38
      %p204 = pneg %p35
      %p205 = pneg %p59
      %p206 = pneg %p56
      %p207 = pneg %p80
      %p208 = pneg %p77
      %p209 = pneg %p106
      %p210 = pneg %p103
      %p211 = scmp.lt.s32.totalorder %s17, 1
      %s212 = scalar_select %p211, %s17, 1
      %s213 = smul.addr %s212, 32
      %s214 = smul.addr %s213, 8
      %s215 = scalar_lea.vmem %s3, %s214
      %p216 = pneg %p132
      %p217 = pneg %p129
      %p218 = scmp.lt.s32.totalorder %s17, 1
      %s219 = scalar_select %p218, %s17, 1
      %s220 = scalar_lea.vmem %s4, %s219
      %p221 = pneg %p158
      %p222 = pneg %p155
      %p223 = scmp.lt.s32.totalorder %s17, 1
      %s224 = scalar_select %p223, %s17, 1
      %s225 = scalar_lea.vmem %s5, %s224
      %p226 = scmp.lt.s32.totalorder %s17, 1
      %s227 = scalar_select %p226, %s17, 1
      %s228 = smul.addr %s227, 32
      %s229 = smul.addr %s228, 8
      %s230 = scalar_lea.vmem %s0, %s229
      %p231 = scmp.lt.s32.totalorder %s17, 1
      %s232 = scalar_select %p231, %s17, 1
      %s233 = smul.addr %s232, 32
      %s234 = smul.addr %s233, 8
      %s235 = scalar_lea.vmem %s3, %s234
      %p236 = scmp.lt.s32.totalorder %s17, 1
      %s237 = scalar_select %p236, %s17, 1
      %s238 = scalar_lea.vmem %s4, %s237
      %p239 = scmp.lt.s32.totalorder %s17, 1
      %s240 = scalar_select %p239, %s17, 1
      %s241 = scalar_lea.vmem %s5, %s240
      %v242 = vld [vmem:[%s230] sm:$0xff]
      %v243 = vld [vmem:[%s230 + $0x8] sm:$0xff]
      %v244 = vld [vmem:[%s230 + $0x10] sm:$0xff]
      %v245 = vld [vmem:[%s230 + $0x18] sm:$0xff]
      %v246 = vld [vmem:[%s230 + $0x20] sm:$0xff]
      %v247 = vld [vmem:[%s230 + $0x28] sm:$0xff]
      %v248 = vld [vmem:[%s230 + $0x30] sm:$0xff]
      %v249 = vld [vmem:[%s230 + $0x38] sm:$0xff]
      %v250 = vld [vmem:[%s230 + $0x40] sm:$0xff]
      %v251 = vld [vmem:[%s230 + $0x48] sm:$0xff]
      %v252 = vld [vmem:[%s230 + $0x50] sm:$0xff]
      %v253 = vld [vmem:[%s230 + $0x58] sm:$0xff]
      %v254 = vld [vmem:[%s230 + $0x60] sm:$0xff]
      %v255 = vld [vmem:[%s230 + $0x68] sm:$0xff]
      %v256 = vld [vmem:[%s230 + $0x70] sm:$0xff]
      %v257 = vld [vmem:[%s230 + $0x78] sm:$0xff]
      %v258 = vld [vmem:[%s230 + $0x80] sm:$0xff]
      %v259 = vld [vmem:[%s230 + $0x88] sm:$0xff]
      %v260 = vld [vmem:[%s230 + $0x90] sm:$0xff]
      %v261 = vld [vmem:[%s230 + $0x98] sm:$0xff]
      %v262 = vld [vmem:[%s230 + $0xa0] sm:$0xff]
      %v263 = vld [vmem:[%s230 + $0xa8] sm:$0xff]
      %v264 = vld [vmem:[%s230 + $0xb0] sm:$0xff]
      %v265 = vld [vmem:[%s230 + $0xb8] sm:$0xff]
      %v266 = vld [vmem:[%s230 + $0xc0] sm:$0xff]
      %v267 = vld [vmem:[%s230 + $0xc8] sm:$0xff]
      %v268 = vld [vmem:[%s230 + $0xd0] sm:$0xff]
      %v269 = vld [vmem:[%s230 + $0xd8] sm:$0xff]
      %v270 = vld [vmem:[%s230 + $0xe0] sm:$0xff]
      %v271 = vld [vmem:[%s230 + $0xe8] sm:$0xff]
      %v272 = vld [vmem:[%s230 + $0xf0] sm:$0xff]
      %v273 = vld [vmem:[%s230 + $0xf8] sm:$0xff]
      %v274 = vld [vmem:[%s1] sm:$0xff]
      %v275 = vld [vmem:[%s1 + $0x8] sm:$0xff]
      %v276 = vld [vmem:[%s1 + $0x10] sm:$0xff]
      %v277 = vld [vmem:[%s1 + $0x18] sm:$0xff]
      %v278 = vld [vmem:[%s1 + $0x20] sm:$0xf]
      %v279 = vld [vmem:[%s2] sm:$0x1]
      %v281 = vlaneseq
      %v282 = vshrl.u32 %v281, 7
      %v283 = vsub.s32 0, %v282
      %v284 = vrot.slane %v279, %v283
      %vm286 = vcmask 293888
      %v288 = vsel %vm286, %v242, 0
      %v291 = vsel %vm286, %v243, 0
      %v294 = vsel %vm286, %v244, 0
      %v297 = vsel %vm286, %v245, 0
      %v300 = vsel %vm286, %v246, 0
      %v303 = vsel %vm286, %v247, 0
      %v306 = vsel %vm286, %v248, 0
      %v309 = vsel %vm286, %v249, 0
      %v312 = vsel %vm286, %v250, 0
      %v315 = vsel %vm286, %v251, 0
      %v318 = vsel %vm286, %v252, 0
      %v321 = vsel %vm286, %v253, 0
      %v324 = vsel %vm286, %v254, 0
      %v327 = vsel %vm286, %v255, 0
      %v330 = vsel %vm286, %v256, 0
      %v333 = vsel %vm286, %v257, 0
      %v336 = vsel %vm286, %v258, 0
      %v339 = vsel %vm286, %v259, 0
      %v342 = vsel %vm286, %v260, 0
      %v345 = vsel %vm286, %v261, 0
      %v348 = vsel %vm286, %v262, 0
      %v351 = vsel %vm286, %v263, 0
      %v354 = vsel %vm286, %v264, 0
      %v357 = vsel %vm286, %v265, 0
      %v360 = vsel %vm286, %v266, 0
      %v363 = vsel %vm286, %v267, 0
      %v366 = vsel %vm286, %v268, 0
      %v369 = vsel %vm286, %v269, 0
      %v372 = vsel %vm286, %v270, 0
      %v375 = vsel %vm286, %v271, 0
      %v378 = vsel %vm286, %v272, 0
      %v381 = vsel %vm286, %v273, 0
      %vm383 = vcmask 1043456
      %v385 = vsel %vm383, %v278, 0
      %387 = vmatprep.subr.mxu0 0.0
      %388 = vmatpush1.msra.mxu0 0.0
      %389 = vmatprep.subr.mxu0 0.0
      %390 = vmatpush1.msra.mxu0 0.0
      %391 = vmatprep.subr.mxu0 0.0
      %392 = vmatpush1.msra.mxu0 0.0
      %393 = vmatprep.subr.mxu0 0.0
      %394 = vmatpush1.msra.mxu0 0.0
      %395 = vmatprep.subr.mxu0 0.0
      %396 = vmatpush1.msra.mxu0 0.0
      %397 = vmatprep.subr.mxu0 0.0
      %398 = vmatpush1.msra.mxu0 0.0
      %399 = vmatprep.subr.mxu0 0.0
      %400 = vmatpush1.msra.mxu0 0.0
      %401 = vmatprep.subr.mxu0 0.0
      %402 = vmatpush1.msra.mxu0 0.0
      %403 = vmatprep.subr.mxu0 0.0
      %404 = vmatpush1.msra.mxu0 0.0
      %405 = vmatprep.subr.mxu0 0.0
      %406 = vmatpush1.msra.mxu0 0.0
      %407 = vmatprep.subr.mxu0 0.0
      %408 = vmatpush1.msra.mxu0 0.0
      %409 = vmatprep.subr.mxu0 0.0
      %410 = vmatpush1.msra.mxu0 %v385
      %411 = vmatprep.subr.mxu0 0.0
      %412 = vmatpush1.msra.mxu0 %v277
      %413 = vmatprep.subr.mxu0 0.0
      %414 = vmatpush1.msra.mxu0 %v276
      %415 = vmatprep.subr.mxu0 0.0
      %416 = vmatpush1.msra.mxu0 %v275
      %417 = vmatprep.subr.mxu0 0.0
      %418 = vmatpush1.msra.mxu0 %v274
      %419 = vmatprep.subr.mxu0 0.0
      %420 = vmatpush2.msra.mxu0 0.0
      %421 = vmatprep.subr.mxu0 0.0
      %422 = vmatpush2.msra.mxu0 0.0
      %423 = vmatprep.subr.mxu0 0.0
      %424 = vmatpush2.msra.mxu0 0.0
      %425 = vmatprep.subr.mxu0 0.0
      %426 = vmatpush2.msra.mxu0 0.0
      %427 = vmatprep.subr.mxu0 0.0
      %428 = vmatpush2.msra.mxu0 0.0
      %429 = vmatprep.subr.mxu0 0.0
      %430 = vmatpush2.msra.mxu0 0.0
      %431 = vmatprep.subr.mxu0 0.0
      %432 = vmatpush2.msra.mxu0 0.0
      %433 = vmatprep.subr.mxu0 0.0
      %434 = vmatpush2.msra.mxu0 0.0
      %435 = vmatprep.subr.mxu0 0.0
      %436 = vmatpush2.msra.mxu0 0.0
      %437 = vmatprep.subr.mxu0 0.0
      %438 = vmatpush2.msra.mxu0 0.0
      %439 = vmatprep.subr.mxu0 0.0
      %440 = vmatpush2.msra.mxu0 0.0
      %441 = vmatprep.subr.mxu0 0.0
      %442 = vmatpush2.msra.mxu0 0.0
      %443 = vmatprep.subr.mxu0 0.0
      %444 = vmatpush2.msra.mxu0 0.0
      %445 = vmatprep.subr.mxu0 0.0
      %446 = vmatpush2.msra.mxu0 0.0
      %447 = vmatprep.subr.mxu0 0.0
      %448 = vmatpush2.msra.mxu0 0.0
      %449 = vmatprep.subr.mxu0 0.0
      %450 = vmatpush2.msra.mxu0 0.0
      %451 = vmatprep.mubr.f32.mxu0 0.0
      %452 = vmatmul.mubr.f32.gmra.mxu0 %v288
      %v453 = vpop.f32.mrf.mxu0
      %v454 = vadd.f32 %v284, %v453
      %v455 = vpop.f32.mrf.mxu0
      %456 = vmatprep.mubr.f32.mxu0 0.0
      %457 = vmatmul.mubr.f32.gmra.mxu0 %v291
      %v458 = vpop.f32.mrf.mxu0
      %v459 = vadd.f32 %v284, %v458
      %v460 = vpop.f32.mrf.mxu0
      %461 = vmatprep.mubr.f32.mxu0 0.0
      %462 = vmatmul.mubr.f32.gmra.mxu0 %v294
      %v463 = vpop.f32.mrf.mxu0
      %v464 = vadd.f32 %v284, %v463
      %v465 = vpop.f32.mrf.mxu0
      %466 = vmatprep.mubr.f32.mxu0 0.0
      %467 = vmatmul.mubr.f32.gmra.mxu0 %v297
      %v468 = vpop.f32.mrf.mxu0
      %v469 = vadd.f32 %v284, %v468
      %v470 = vpop.f32.mrf.mxu0
      %471 = vmatprep.mubr.f32.mxu0 0.0
      %472 = vmatmul.mubr.f32.gmra.mxu0 %v300
      %v473 = vpop.f32.mrf.mxu0
      %v474 = vadd.f32 %v284, %v473
      %v475 = vpop.f32.mrf.mxu0
      %476 = vmatprep.mubr.f32.mxu0 0.0
      %477 = vmatmul.mubr.f32.gmra.mxu0 %v303
      %v478 = vpop.f32.mrf.mxu0
      %v479 = vadd.f32 %v284, %v478
      %v480 = vpop.f32.mrf.mxu0
      %481 = vmatprep.mubr.f32.mxu0 0.0
      %482 = vmatmul.mubr.f32.gmra.mxu0 %v306
      %v483 = vpop.f32.mrf.mxu0
      %v484 = vadd.f32 %v284, %v483
      %v485 = vpop.f32.mrf.mxu0
      %486 = vmatprep.mubr.f32.mxu0 0.0
      %487 = vmatmul.mubr.f32.gmra.mxu0 %v309
      %v488 = vpop.f32.mrf.mxu0
      %v489 = vadd.f32 %v284, %v488
      %v490 = vpop.f32.mrf.mxu0
      %491 = vmatprep.mubr.f32.mxu0 0.0
      %492 = vmatmul.mubr.f32.gmra.mxu0 %v312
      %v493 = vpop.f32.mrf.mxu0
      %v494 = vadd.f32 %v284, %v493
      %v495 = vpop.f32.mrf.mxu0
      %496 = vmatprep.mubr.f32.mxu0 0.0
      %497 = vmatmul.mubr.f32.gmra.mxu0 %v315
      %v498 = vpop.f32.mrf.mxu0
      %v499 = vadd.f32 %v284, %v498
      %v500 = vpop.f32.mrf.mxu0
      %501 = vmatprep.mubr.f32.mxu0 0.0
      %502 = vmatmul.mubr.f32.gmra.mxu0 %v318
      %v503 = vpop.f32.mrf.mxu0
      %v504 = vadd.f32 %v284, %v503
      %v505 = vpop.f32.mrf.mxu0
      %506 = vmatprep.mubr.f32.mxu0 0.0
      %507 = vmatmul.mubr.f32.gmra.mxu0 %v321
      %v508 = vpop.f32.mrf.mxu0
      %v509 = vadd.f32 %v284, %v508
      %v510 = vpop.f32.mrf.mxu0
      %511 = vmatprep.mubr.f32.mxu0 0.0
      %512 = vmatmul.mubr.f32.gmra.mxu0 %v324
      %v513 = vpop.f32.mrf.mxu0
      %v514 = vadd.f32 %v284, %v513
      %v515 = vpop.f32.mrf.mxu0
      %516 = vmatprep.mubr.f32.mxu0 0.0
      %517 = vmatmul.mubr.f32.gmra.mxu0 %v327
      %v518 = vpop.f32.mrf.mxu0
      %v519 = vadd.f32 %v284, %v518
      %v520 = vpop.f32.mrf.mxu0
      %521 = vmatprep.mubr.f32.mxu0 0.0
      %522 = vmatmul.mubr.f32.gmra.mxu0 %v330
      %v523 = vpop.f32.mrf.mxu0
      %v524 = vadd.f32 %v284, %v523
      %v525 = vpop.f32.mrf.mxu0
      %526 = vmatprep.mubr.f32.mxu0 0.0
      %527 = vmatmul.mubr.f32.gmra.mxu0 %v333
      %v528 = vpop.f32.mrf.mxu0
      %v529 = vadd.f32 %v284, %v528
      %v530 = vpop.f32.mrf.mxu0
      %531 = vmatprep.mubr.f32.mxu0 0.0
      %532 = vmatmul.mubr.f32.gmra.mxu0 %v336
      %v533 = vpop.f32.mrf.mxu0
      %v534 = vadd.f32 %v284, %v533
      %v535 = vpop.f32.mrf.mxu0
      %536 = vmatprep.mubr.f32.mxu0 0.0
      %537 = vmatmul.mubr.f32.gmra.mxu0 %v339
      %v538 = vpop.f32.mrf.mxu0
      %v539 = vadd.f32 %v284, %v538
      %v540 = vpop.f32.mrf.mxu0
      %541 = vmatprep.mubr.f32.mxu0 0.0
      %542 = vmatmul.mubr.f32.gmra.mxu0 %v342
      %v543 = vpop.f32.mrf.mxu0
      %v544 = vadd.f32 %v284, %v543
      %v545 = vpop.f32.mrf.mxu0
      %546 = vmatprep.mubr.f32.mxu0 0.0
      %547 = vmatmul.mubr.f32.gmra.mxu0 %v345
      %v548 = vpop.f32.mrf.mxu0
      %v549 = vadd.f32 %v284, %v548
      %v550 = vpop.f32.mrf.mxu0
      %551 = vmatprep.mubr.f32.mxu0 0.0
      %552 = vmatmul.mubr.f32.gmra.mxu0 %v348
      %v553 = vpop.f32.mrf.mxu0
      %v554 = vadd.f32 %v284, %v553
      %v555 = vpop.f32.mrf.mxu0
      %556 = vmatprep.mubr.f32.mxu0 0.0
      %557 = vmatmul.mubr.f32.gmra.mxu0 %v351
      %v558 = vpop.f32.mrf.mxu0
      %v559 = vadd.f32 %v284, %v558
      %v560 = vpop.f32.mrf.mxu0
      %561 = vmatprep.mubr.f32.mxu0 0.0
      %562 = vmatmul.mubr.f32.gmra.mxu0 %v354
      %v563 = vpop.f32.mrf.mxu0
      %v564 = vadd.f32 %v284, %v563
      %v565 = vpop.f32.mrf.mxu0
      %566 = vmatprep.mubr.f32.mxu0 0.0
      %567 = vmatmul.mubr.f32.gmra.mxu0 %v357
      %v568 = vpop.f32.mrf.mxu0
      %v569 = vadd.f32 %v284, %v568
      %v570 = vpop.f32.mrf.mxu0
      %571 = vmatprep.mubr.f32.mxu0 0.0
      %572 = vmatmul.mubr.f32.gmra.mxu0 %v360
      %v573 = vpop.f32.mrf.mxu0
      %v574 = vadd.f32 %v284, %v573
      %v575 = vpop.f32.mrf.mxu0
      %576 = vmatprep.mubr.f32.mxu0 0.0
      %577 = vmatmul.mubr.f32.gmra.mxu0 %v363
      %v578 = vpop.f32.mrf.mxu0
      %v579 = vadd.f32 %v284, %v578
      %v580 = vpop.f32.mrf.mxu0
      %581 = vmatprep.mubr.f32.mxu0 0.0
      %582 = vmatmul.mubr.f32.gmra.mxu0 %v366
      %v583 = vpop.f32.mrf.mxu0
      %v584 = vadd.f32 %v284, %v583
      %v585 = vpop.f32.mrf.mxu0
      %586 = vmatprep.mubr.f32.mxu0 0.0
      %587 = vmatmul.mubr.f32.gmra.mxu0 %v369
      %v588 = vpop.f32.mrf.mxu0
      %v589 = vadd.f32 %v284, %v588
      %v590 = vpop.f32.mrf.mxu0
      %591 = vmatprep.mubr.f32.mxu0 0.0
      %592 = vmatmul.mubr.f32.gmra.mxu0 %v372
      %v593 = vpop.f32.mrf.mxu0
      %v594 = vadd.f32 %v284, %v593
      %v595 = vpop.f32.mrf.mxu0
      %596 = vmatprep.mubr.f32.mxu0 0.0
      %597 = vmatmul.mubr.f32.gmra.mxu0 %v375
      %v598 = vpop.f32.mrf.mxu0
      %v599 = vadd.f32 %v284, %v598
      %v600 = vpop.f32.mrf.mxu0
      %601 = vmatprep.mubr.f32.mxu0 0.0
      %602 = vmatmul.mubr.f32.gmra.mxu0 %v378
      %v603 = vpop.f32.mrf.mxu0
      %v604 = vadd.f32 %v284, %v603
      %v605 = vpop.f32.mrf.mxu0
      %606 = vmatprep.mubr.f32.mxu0 0.0
      %607 = vmatmul.mubr.f32.gmra.mxu0 %v381
      %v608 = vpop.f32.mrf.mxu0
      %v609 = vadd.f32 %v284, %v608
      %v610 = vpop.f32.mrf.mxu0
      %611 = vdwg.mxu0
      %612 = vst [vmem:[%s235] sm:$0xff] %v454
      %613 = vst [vmem:[%s235 + $0x8] sm:$0xff] %v459
      %614 = vst [vmem:[%s235 + $0x10] sm:$0xff] %v464
      %615 = vst [vmem:[%s235 + $0x18] sm:$0xff] %v469
      %616 = vst [vmem:[%s235 + $0x20] sm:$0xff] %v474
      %617 = vst [vmem:[%s235 + $0x28] sm:$0xff] %v479
      %618 = vst [vmem:[%s235 + $0x30] sm:$0xff] %v484
      %619 = vst [vmem:[%s235 + $0x38] sm:$0xff] %v489
      %620 = vst [vmem:[%s235 + $0x40] sm:$0xff] %v494
      %621 = vst [vmem:[%s235 + $0x48] sm:$0xff] %v499
      %622 = vst [vmem:[%s235 + $0x50] sm:$0xff] %v504
      %623 = vst [vmem:[%s235 + $0x58] sm:$0xff] %v509
      %624 = vst [vmem:[%s235 + $0x60] sm:$0xff] %v514
      %625 = vst [vmem:[%s235 + $0x68] sm:$0xff] %v519
      %626 = vst [vmem:[%s235 + $0x70] sm:$0xff] %v524
      %627 = vst [vmem:[%s235 + $0x78] sm:$0xff] %v529
      %628 = vst [vmem:[%s235 + $0x80] sm:$0xff] %v534
      %629 = vst [vmem:[%s235 + $0x88] sm:$0xff] %v539
      %630 = vst [vmem:[%s235 + $0x90] sm:$0xff] %v544
      %631 = vst [vmem:[%s235 + $0x98] sm:$0xff] %v549
      %632 = vst [vmem:[%s235 + $0xa0] sm:$0xff] %v554
      %633 = vst [vmem:[%s235 + $0xa8] sm:$0xff] %v559
      %634 = vst [vmem:[%s235 + $0xb0] sm:$0xff] %v564
      %635 = vst [vmem:[%s235 + $0xb8] sm:$0xff] %v569
      %636 = vst [vmem:[%s235 + $0xc0] sm:$0xff] %v574
      %637 = vst [vmem:[%s235 + $0xc8] sm:$0xff] %v579
      %638 = vst [vmem:[%s235 + $0xd0] sm:$0xff] %v584
      %639 = vst [vmem:[%s235 + $0xd8] sm:$0xff] %v589
      %640 = vst [vmem:[%s235 + $0xe0] sm:$0xff] %v594
      %641 = vst [vmem:[%s235 + $0xe8] sm:$0xff] %v599
      %642 = vst [vmem:[%s235 + $0xf0] sm:$0xff] %v604
      %643 = vst [vmem:[%s235 + $0xf8] sm:$0xff] %v609
      %v644 = vadd.f32 %v454, %v459
      %v645 = vadd.f32 %v644, %v464
      %v646 = vadd.f32 %v645, %v469
      %v647 = vadd.f32 %v646, %v474
      %v648 = vadd.f32 %v647, %v479
      %v649 = vadd.f32 %v648, %v484
      %v650 = vadd.f32 %v649, %v489
      %v651 = vadd.f32 %v650, %v494
      %v652 = vadd.f32 %v651, %v499
      %v653 = vadd.f32 %v652, %v504
      %v654 = vadd.f32 %v653, %v509
      %v655 = vadd.f32 %v654, %v514
      %v656 = vadd.f32 %v655, %v519
      %v657 = vadd.f32 %v656, %v524
      %v658 = vadd.f32 %v657, %v529
      %v659 = vadd.f32 %v658, %v534
      %v660 = vadd.f32 %v659, %v539
      %v661 = vadd.f32 %v660, %v544
      %v662 = vadd.f32 %v661, %v549
      %v663 = vadd.f32 %v662, %v554
      %v664 = vadd.f32 %v663, %v559
      %v665 = vadd.f32 %v664, %v564
      %v666 = vadd.f32 %v665, %v569
      %v667 = vadd.f32 %v666, %v574
      %v668 = vadd.f32 %v667, %v579
      %v669 = vadd.f32 %v668, %v584
      %v670 = vadd.f32 %v669, %v589
      %v671 = vadd.f32 %v670, %v594
      %v672 = vadd.f32 %v671, %v599
      %v673 = vadd.f32 %v672, %v604
      %v674 = vadd.f32 %v673, %v609
      %v675 = vrot.slane %v674, 4
      %v676 = vadd.f32 %v674, %v675
      %v677 = vrot.slane %v676, 2
      %v678 = vadd.f32 %v676, %v677
      %v679 = vrot.slane %v678, 1
      %v680 = vadd.f32 %v678, %v679
      %681 = vst [vmem:[%s238] sm:$0x1] %v680
      %v682 = vmul.f32 %v454, %v454
      %v683 = vmul.f32 %v459, %v459
      %v684 = vmul.f32 %v464, %v464
      %v685 = vmul.f32 %v469, %v469
      %v686 = vmul.f32 %v474, %v474
      %v687 = vmul.f32 %v479, %v479
      %v688 = vmul.f32 %v484, %v484
      %v689 = vmul.f32 %v489, %v489
      %v690 = vmul.f32 %v494, %v494
      %v691 = vmul.f32 %v499, %v499
      %v692 = vmul.f32 %v504, %v504
      %v693 = vmul.f32 %v509, %v509
      %v694 = vmul.f32 %v514, %v514
      %v695 = vmul.f32 %v519, %v519
      %v696 = vmul.f32 %v524, %v524
      %v697 = vmul.f32 %v529, %v529
      %v698 = vmul.f32 %v534, %v534
      %v699 = vmul.f32 %v539, %v539
      %v700 = vmul.f32 %v544, %v544
      %v701 = vmul.f32 %v549, %v549
      %v702 = vmul.f32 %v554, %v554
      %v703 = vmul.f32 %v559, %v559
      %v704 = vmul.f32 %v564, %v564
      %v705 = vmul.f32 %v569, %v569
      %v706 = vmul.f32 %v574, %v574
      %v707 = vmul.f32 %v579, %v579
      %v708 = vmul.f32 %v584, %v584
      %v709 = vmul.f32 %v589, %v589
      %v710 = vmul.f32 %v594, %v594
      %v711 = vmul.f32 %v599, %v599
      %v712 = vmul.f32 %v604, %v604
      %v713 = vmul.f32 %v609, %v609
      %v714 = vadd.f32 %v682, %v683
      %v715 = vadd.f32 %v714, %v684
      %v716 = vadd.f32 %v715, %v685
      %v717 = vadd.f32 %v716, %v686
      %v718 = vadd.f32 %v717, %v687
      %v719 = vadd.f32 %v718, %v688
      %v720 = vadd.f32 %v719, %v689
      %v721 = vadd.f32 %v720, %v690
      %v722 = vadd.f32 %v721, %v691
      %v723 = vadd.f32 %v722, %v692
      %v724 = vadd.f32 %v723, %v693
      %v725 = vadd.f32 %v724, %v694
      %v726 = vadd.f32 %v725, %v695
      %v727 = vadd.f32 %v726, %v696
      %v728 = vadd.f32 %v727, %v697
      %v729 = vadd.f32 %v728, %v698
      %v730 = vadd.f32 %v729, %v699
      %v731 = vadd.f32 %v730, %v700
      %v732 = vadd.f32 %v731, %v701
      %v733 = vadd.f32 %v732, %v702
      %v734 = vadd.f32 %v733, %v703
      %v735 = vadd.f32 %v734, %v704
      %v736 = vadd.f32 %v735, %v705
      %v737 = vadd.f32 %v736, %v706
      %v738 = vadd.f32 %v737, %v707
      %v739 = vadd.f32 %v738, %v708
      %v740 = vadd.f32 %v739, %v709
      %v741 = vadd.f32 %v740, %v710
      %v742 = vadd.f32 %v741, %v711
      %v743 = vadd.f32 %v742, %v712
      %v744 = vadd.f32 %v743, %v713
      %v745 = vrot.slane %v744, 4
      %v746 = vadd.f32 %v744, %v745
      %v747 = vrot.slane %v746, 2
      %v748 = vadd.f32 %v746, %v747
      %v749 = vrot.slane %v748, 1
      %v750 = vadd.f32 %v748, %v749
      %751 = vst [vmem:[%s241] sm:$0x1] %v750
      %p752 = scmp.lt.s32.totalorder %s17, 1
      %s753 = scalar_select %p752, %s17, 1
      %s754 = smul.addr %s753, 32
      %s755 = smul.addr %s754, 8
      %s756 = scalar_lea.vmem %s3, %s755
      %p757 = scmp.lt.s32.totalorder %s17, 1
      %s758 = scalar_select %p757, %s17, 1
      %s759 = scalar_lea.vmem %s4, %s758
      %p760 = scmp.lt.s32.totalorder %s17, 1
      %s761 = scalar_select %p760, %s17, 1
      %s762 = scalar_lea.vmem %s5, %s761
      // Predicated region
      $region33: #{conv_block_forward.2} parent=31 // pred_check
        %p763 = pneg %p103
      $region34: #{conv_block_forward.2} parent=31 // pred_check_branch
        %765 = sbr.rel (%p763) target = $region36
      $region35: #{conv_block_forward.2} parent=31 // pred_region
        _
      $region36: #{conv_block_forward.2} parent=31 // pred_fallthru
        _
      // Predicated region
      $region37: #{conv_block_forward.2} parent=31 // pred_check
        %p766 = pneg %p129
      $region38: #{conv_block_forward.2} parent=31 // pred_check_branch
        %768 = sbr.rel (%p766) target = $region40
      $region39: #{conv_block_forward.2} parent=31 // pred_region
        _
      $region40: #{conv_block_forward.2} parent=31 // pred_fallthru
        _
      // Predicated region
      $region41: #{conv_block_forward.2} parent=31 // pred_check
        %p769 = pneg %p155
      $region42: #{conv_block_forward.2} parent=31 // pred_check_branch
        %771 = sbr.rel (%p769) target = $region44
      $region43: #{conv_block_forward.2} parent=31 // pred_region
        _
      $region44: #{conv_block_forward.2} parent=31 // pred_fallthru
        _
    $region32: #{conv_block_forward.2} parent=5 // pred_fallthru
      _
    %p772 = scmp.le.s32.totalorder 2, %s12
    // Predicated region
    $region45: #{conv_block_forward.2} parent=5 // pred_check
      %p773 = pneg %p772
    $region46: #{conv_block_forward.2} parent=5 // pred_check_branch
      %775 = sbr.rel (%p773) target = $region48
    $region47: #{conv_block_forward.2} parent=5 // pred_region
      %s776 = ssub.s32 %s12, 2
      // Predicated region
      $region49: #{conv_block_forward.2} parent=47 // pred_check
        %p777 = pneg %p109
      $region50: #{conv_block_forward.2} parent=47 // pred_check_branch
        %779 = sbr.rel (%p777) target = $region52
      $region51: #{conv_block_forward.2} parent=47 // pred_region
        %p780 = scmp.lt.s32.totalorder %s18, 1
        %s781 = scalar_select %p780, %s18, 1
        %s782 = smul.addr %s781, 32
        %s783 = smul.addr %s782, 8
        %s784 = scalar_lea.vmem %s3, %s783
      $region52: #{conv_block_forward.2} parent=47 // pred_fallthru
        _
      // Predicated region
      $region53: #{conv_block_forward.2} parent=47 // pred_check
        %p785 = pneg %p135
      $region54: #{conv_block_forward.2} parent=47 // pred_check_branch
        %787 = sbr.rel (%p785) target = $region56
      $region55: #{conv_block_forward.2} parent=47 // pred_region
        %p788 = scmp.lt.s32.totalorder %s18, 1
        %s789 = scalar_select %p788, %s18, 1
        %s790 = scalar_lea.vmem %s4, %s789
      $region56: #{conv_block_forward.2} parent=47 // pred_fallthru
        _
      // Predicated region
      $region57: #{conv_block_forward.2} parent=47 // pred_check
        %p791 = pneg %p161
      $region58: #{conv_block_forward.2} parent=47 // pred_check_branch
        %793 = sbr.rel (%p791) target = $region60
      $region59: #{conv_block_forward.2} parent=47 // pred_region
        %p794 = scmp.lt.s32.totalorder %s18, 1
        %s795 = scalar_select %p794, %s18, 1
        %s796 = scalar_lea.vmem %s5, %s795
      $region60: #{conv_block_forward.2} parent=47 // pred_fallthru
        _
    $region48: #{conv_block_forward.2} parent=5 // pred_fallthru
      _
  $region6: #{conv_block_forward.2} parent=0 // loop_footer
    %s16 = sadd.s32 1, %s12
  $region7: #{conv_block_forward.2} parent=0 // loop_footer_branch
    %11 = sbr.rel target = $region3
  $region8: #{conv_block_forward.2} parent=0 // loop_exit
    _

</llo_original>
